<compile_context>
chip_gen: v5e
topology: v5e:2x2
jax: 0.10.0
libtpu: 0.0.40
codegen_flags: <defaults>
</compile_context>

<pallas_src>
import functools
import math

import jax
import jax.numpy as jnp
from jax.experimental import pallas as pl
from jax.experimental.pallas import tpu as pltpu


def _round_up(x, m):
    return ((x + m - 1) // m) * m


def _rbf_kernel(dist_ref, const_ref, out_ref, *, cutoff, group):
    # dist_ref : (T, group)  float32  packed distances (column g = edge offset g in row)
    # const_ref: (3, W)      float32  rows: means (tiled), -betas (tiled), lane->group id
    # out_ref  : (T, W)      W = group * num_rbf   (lane-dense)
    T, W = out_ref.shape
    dp = dist_ref[...]
    c = const_ref[...]
    means = c[0:1, :]        # (1, W)
    neg_betas = c[1:2, :]    # (1, W)
    grp = c[2:3, :]          # (1, W) float group ids 0..group-1

    # Expand each packed edge's distance across its num_rbf lanes.
    d = jnp.broadcast_to(dp[:, 0:1], (T, W))
    for g in range(1, group):
        d = jnp.where(grp == g, dp[:, g:g + 1], d)

    soft_cutoff = 0.5 * (jnp.cos(d * (math.pi / cutoff)) + 1.0)
    soft_cutoff = jnp.where(d < cutoff, soft_cutoff, 0.0)
    diff = jnp.exp(-d) - means
    out_ref[...] = (soft_cutoff * jnp.exp(neg_betas * jnp.square(diff))).astype(out_ref.dtype)


def rbf_emb_params(num_rbf, soft_cutoff_upper):
    """Deterministic buffers identical to the PyTorch _initial_params()."""
    start_value = math.exp(-soft_cutoff_upper)
    end_value = math.exp(-0.0)
    means = jnp.linspace(start_value, end_value, num_rbf, dtype=jnp.float32)
    betas = jnp.full(
        (num_rbf,), (2.0 / num_rbf * (end_value - start_value)) ** (-2), dtype=jnp.float32
    )
    return means, betas


def rbf_emb_forward(dist, means, betas, soft_cutoff_upper, *,
                    tile_rows=8192, out_dtype=jnp.float32):
    """dist: (E,) -> (E, num_rbf) in out_dtype (default float32)."""
    E = dist.shape[0]
    R = means.shape[0]

    # Lane packing: `group` edges share one 128-lane output row when possible.
    if R <= 128 and 128 % R == 0 and (128 // R) <= 32:
        group = 128 // R
    else:
        group = 1  # num_rbf >= 128 (already lane-dense) or awkward width
    W = group * R

    # Pad the edge count only up to a multiple of `group` so rows pack exactly.
    E_pad = _round_up(E, group)
    N = E_pad // group                                   # packed rows

    d = dist.astype(jnp.float32)
    if E_pad != E:
        d = jnp.pad(d, (0, E_pad - E))
    d_packed = d.reshape(N, group)

    lane_group = (jnp.arange(W, dtype=jnp.int32) // R).astype(jnp.float32)
    const = jnp.stack([
        jnp.tile(means.astype(jnp.float32), group),
        jnp.tile(-betas.astype(jnp.float32), group),
        lane_group,
    ], axis=0)                                           # (3, W)

    # Row tile: as large as comfortably fits VMEM (amortizes per-step overhead).
    tr = max(8, _round_up(min(int(tile_rows), N), 8))
    if tr >= N:
        tr = N                                           # full extent is always legal
    grid = (pl.cdiv(N, tr),)                             # last block may be partial

    kernel = functools.partial(_rbf_kernel,
                               cutoff=float(soft_cutoff_upper),
                               group=group)

    out = pl.pallas_call(
        kernel,
        out_shape=jax.ShapeDtypeStruct((N, W), out_dtype),
        grid_spec=pltpu.PrefetchScalarGridSpec(
            num_scalar_prefetch=0,
            grid=grid,
            in_specs=[
                pl.BlockSpec((tr, group), lambda i: (i, 0)),
                pl.BlockSpec((3, W), lambda i: (0, 0)),
            ],
            out_specs=pl.BlockSpec((tr, W), lambda i: (i, 0)),
        ),
        compiler_params=pltpu.CompilerParams(
            dimension_semantics=("parallel",),
            vmem_limit_bytes=32 * 1024 * 1024),
    )(d_packed, const)

    out = out.reshape(E_pad, R)
    if E_pad != E:
        out = out[:E]
    return out


def rbf_emb_reference(dist, means, betas, soft_cutoff_upper):
    """Plain-JAX reference mirroring the PyTorch forward exactly."""
    d = dist[..., None]
    sc = 0.5 * (jnp.cos(d * math.pi / soft_cutoff_upper) + 1.0)
    sc = sc * (d < soft_cutoff_upper).astype(jnp.float32)
    return sc * jnp.exp(-betas * jnp.square(jnp.exp(-d) - means))


if __name__ == "__main__":
    soft_cutoff_upper = 5.0
    key = jax.random.PRNGKey(0)

    # (num_rbf, E, tile_rows override) — small, fast cases covering:
    #   exact pack / non-multiple-of-8 full-extent block / padded tail /
    #   multi-step grid with a partial last block / group=1 fallback.
    cases = [
        (32, 256, None),
        (32, 300, None),
        (32, 301, None),
        (32, 2500, 64),
        (24, 200, None),
    ]
    for num_rbf, E, tr in cases:
        means, betas = rbf_emb_params(num_rbf, soft_cutoff_upper)
        key, sub = jax.random.split(key)
        # distances in [0, 1.2*cutoff) so the (dist < cutoff) mask is exercised
        dist = jax.random.uniform(
            sub, (E,), dtype=jnp.float32, minval=0.0, maxval=1.2 * soft_cutoff_upper
        )

        kwargs = {} if tr is None else {"tile_rows": tr}
        out = rbf_emb_forward(dist, means, betas, soft_cutoff_upper, **kwargs)
        out = jax.block_until_ready(out)

        ref = rbf_emb_reference(dist, means, betas, soft_cutoff_upper)
        assert out.shape == (E, num_rbf), (out.shape, (E, num_rbf))
        assert jnp.allclose(out, ref, atol=1e-5, rtol=1e-5), \
            f"mismatch vs reference (num_rbf={num_rbf}, E={E})"

    print("KERNEL_OK")
</pallas_src>

<mosaic_0001>
module attributes {stable_mosaic.version = 11 : i64} {
  func.func @_rbf_kernel(%arg0: i32, %arg1: memref<64x4xf32, #tpu.memory_space<vmem>>, %arg2: memref<3x128xf32, #tpu.memory_space<vmem>>, %arg3: memref<64x128xf32, #tpu.memory_space<vmem>>) attributes {dimension_semantics = [#tpu.dimension_semantics<parallel>], iteration_bounds = array<i64: 1>, scalar_prefetch = 0 : i64, scratch_operands = 0 : i64, tpu.core_type = #tpu.core_type<tc>, window_params = [{transform_indices = @transform_0, window_bounds = array<i64: 64, 4>}, {pipeline_mode = #tpu.pipeline_mode<synchronous>, transform_indices = @transform_1, window_bounds = array<i64: 3, 128>}, {transform_indices = @transform_2, window_bounds = array<i64: 64, 128>}]} {
    %c0 = arith.constant 0 : index
    %c0_0 = arith.constant 0 : index
    %0 = vector.load %arg1[%c0, %c0_0] : memref<64x4xf32, #tpu.memory_space<vmem>>, vector<64x4xf32>
    %c0_1 = arith.constant 0 : index
    %c0_2 = arith.constant 0 : index
    %1 = vector.load %arg2[%c0_1, %c0_2] : memref<3x128xf32, #tpu.memory_space<vmem>>, vector<3x128xf32>
    %2 = vector.extract_strided_slice %1 {offsets = [0, 0], sizes = [1, 128], strides = [1, 1]} : vector<3x128xf32> to vector<1x128xf32>
    %3 = vector.extract_strided_slice %1 {offsets = [1, 0], sizes = [1, 128], strides = [1, 1]} : vector<3x128xf32> to vector<1x128xf32>
    %4 = vector.extract_strided_slice %1 {offsets = [2, 0], sizes = [1, 128], strides = [1, 1]} : vector<3x128xf32> to vector<1x128xf32>
    %5 = vector.extract_strided_slice %0 {offsets = [0, 0], sizes = [64, 1], strides = [1, 1]} : vector<64x4xf32> to vector<64x1xf32>
    %6 = vector.shape_cast %5 : vector<64x1xf32> to vector<64x1xf32>
    %7 = vector.broadcast %6 : vector<64x1xf32> to vector<64x128xf32>
    %cst = arith.constant 1.000000e+00 : f32
    %8 = vector.broadcast %cst : f32 to vector<1x128xf32>
    %9 = arith.cmpf oeq, %4, %8 : vector<1x128xf32>
    %10 = vector.extract_strided_slice %0 {offsets = [0, 1], sizes = [64, 1], strides = [1, 1]} : vector<64x4xf32> to vector<64x1xf32>
    %11 = vector.shape_cast %9 : vector<1x128xi1> to vector<1x128xi1>
    %12 = vector.broadcast %11 : vector<1x128xi1> to vector<64x128xi1>
    %13 = vector.shape_cast %10 : vector<64x1xf32> to vector<64x1xf32>
    %14 = vector.broadcast %13 : vector<64x1xf32> to vector<64x128xf32>
    %15 = arith.select %12, %14, %7 : vector<64x128xi1>, vector<64x128xf32>
    %cst_3 = arith.constant 2.000000e+00 : f32
    %16 = vector.broadcast %cst_3 : f32 to vector<1x128xf32>
    %17 = arith.cmpf oeq, %4, %16 : vector<1x128xf32>
    %18 = vector.extract_strided_slice %0 {offsets = [0, 2], sizes = [64, 1], strides = [1, 1]} : vector<64x4xf32> to vector<64x1xf32>
    %19 = vector.shape_cast %17 : vector<1x128xi1> to vector<1x128xi1>
    %20 = vector.broadcast %19 : vector<1x128xi1> to vector<64x128xi1>
    %21 = vector.shape_cast %18 : vector<64x1xf32> to vector<64x1xf32>
    %22 = vector.broadcast %21 : vector<64x1xf32> to vector<64x128xf32>
    %23 = arith.select %20, %22, %15 : vector<64x128xi1>, vector<64x128xf32>
    %cst_4 = arith.constant 3.000000e+00 : f32
    %24 = vector.broadcast %cst_4 : f32 to vector<1x128xf32>
    %25 = arith.cmpf oeq, %4, %24 : vector<1x128xf32>
    %26 = vector.extract_strided_slice %0 {offsets = [0, 3], sizes = [64, 1], strides = [1, 1]} : vector<64x4xf32> to vector<64x1xf32>
    %27 = vector.shape_cast %25 : vector<1x128xi1> to vector<1x128xi1>
    %28 = vector.broadcast %27 : vector<1x128xi1> to vector<64x128xi1>
    %29 = vector.shape_cast %26 : vector<64x1xf32> to vector<64x1xf32>
    %30 = vector.broadcast %29 : vector<64x1xf32> to vector<64x128xf32>
    %31 = arith.select %28, %30, %23 : vector<64x128xi1>, vector<64x128xf32>
    %cst_5 = arith.constant 0.628318548 : f32
    %32 = vector.broadcast %cst_5 : f32 to vector<64x128xf32>
    %33 = arith.mulf %31, %32 : vector<64x128xf32>
    %34 = math.cos %33 : vector<64x128xf32>
    %cst_6 = arith.constant 1.000000e+00 : f32
    %35 = vector.broadcast %cst_6 : f32 to vector<64x128xf32>
    %36 = arith.addf %34, %35 : vector<64x128xf32>
    %cst_7 = arith.constant 5.000000e-01 : f32
    %37 = vector.broadcast %cst_7 : f32 to vector<64x128xf32>
    %38 = arith.mulf %37, %36 : vector<64x128xf32>
    %cst_8 = arith.constant 5.000000e+00 : f32
    %39 = vector.broadcast %cst_8 : f32 to vector<64x128xf32>
    %40 = arith.cmpf olt, %31, %39 : vector<64x128xf32>
    %cst_9 = arith.constant 0.000000e+00 : f32
    %41 = vector.broadcast %cst_9 : f32 to vector<64x128xf32>
    %42 = arith.select %40, %38, %41 : vector<64x128xi1>, vector<64x128xf32>
    %cst_10 = arith.constant 0.000000e+00 : f32
    %43 = vector.broadcast %cst_10 : f32 to vector<64x128xf32>
    %44 = arith.subf %43, %31 : vector<64x128xf32>
    %45 = math.exp %44 : vector<64x128xf32>
    %46 = vector.broadcast %2 : vector<1x128xf32> to vector<64x128xf32>
    %47 = arith.subf %45, %46 : vector<64x128xf32>
    %48 = arith.mulf %47, %47 : vector<64x128xf32>
    %49 = vector.broadcast %3 : vector<1x128xf32> to vector<64x128xf32>
    %50 = arith.mulf %49, %48 : vector<64x128xf32>
    %51 = math.exp %50 : vector<64x128xf32>
    %52 = arith.mulf %42, %51 : vector<64x128xf32>
    %c0_11 = arith.constant 0 : index
    %c0_12 = arith.constant 0 : index
    %53 = vector.load %arg3[%c0_11, %c0_12] : memref<64x128xf32, #tpu.memory_space<vmem>>, vector<64x128xf32>
    tpu.vector_store %arg3[%c0_11, %c0_12], %52 {strides = array<i32>} : memref<64x128xf32, #tpu.memory_space<vmem>>, vector<64x128xf32>,
    return
  }
  func.func @transform_0(%arg0: i32) -> (i32, i32) {
    %c0_i32 = arith.constant 0 : i32
    %c0_i32_0 = arith.constant 0 : i32
    return %arg0, %c0_i32 : i32, i32
  }
  func.func @transform_1(%arg0: i32) -> (i32, i32) {
    %c0_i32 = arith.constant 0 : i32
    %c0_i32_0 = arith.constant 0 : i32
    %c0_i32_1 = arith.constant 0 : i32
    return %c0_i32, %c0_i32_0 : i32, i32
  }
  func.func @transform_2(%arg0: i32) -> (i32, i32) {
    %c0_i32 = arith.constant 0 : i32
    %c0_i32_0 = arith.constant 0 : i32
    return %arg0, %c0_i32 : i32, i32
  }
}

</mosaic_0001>

<llo_original>
// kernel: tpu_custom_call.1
$region0: #{tpu_custom_call.1}
  #allocation0 [shape = 'u32[]', space=smem, size = 0x4, offset = 0x4, fixed_abs, tag = 'smem constant byte address 0x4 - core index']
  #allocation1 [shape = 'u32[72,128]{1,0:T(1,128)}', space=vmem, size = 0x9000, scoped, tag = 'internal scratch']
  %s0 = inlined_call_operand.vmem [shape: f32[64,4], index: 0, kind: input, shape index: {}]
  %s1 = inlined_call_operand.vmem [shape: f32[3,128], index: 1, kind: input, shape index: {}]
  %s2 = inlined_call_operand.hbm [shape: f32[64,128], index: 2, kind: output, shape index: {}]
  %s3 = sld [smem:[#allocation0]]
  $region18: #{tpu_custom_call.1} parent=0
    _
  %s5 = ssub.s32 1, %s3
  %s6 = scalar_select 0, %s5, %s3
  $region1: #{tpu_custom_call.1} parent=0
    #allocation2 [shape = 'u8[32768]{0}', space=vmem, size = 0x8000, scoped, tag = 'output window, operand 0, single buffered']
    #allocation3 [shape = 's32[1]{0}', space=sflag, size = 0x4, scoped, tag = 'scoped memory for tpu_custom_call.1']
    %7 = vsyncpa [#allocation3], 0
    // Predicated region
    $region2: #{tpu_custom_call.1} parent=1 // pred_check
      _
    $region3: #{tpu_custom_call.1} parent=1 // pred_check_branch
      %9 = sbr.rel (0) target = $region5
    $region4: #{tpu_custom_call.1} parent=1 // pred_region
      _
    $region5: #{tpu_custom_call.1} parent=1 // pred_fallthru
      _
    // Predicated region
    $region6: #{tpu_custom_call.1} parent=1 // pred_check
      _
    $region7: #{tpu_custom_call.1} parent=1 // pred_check_branch
      %11 = sbr.rel (0) target = $region9
    $region8: #{tpu_custom_call.1} parent=1 // pred_region
      _
    $region9: #{tpu_custom_call.1} parent=1 // pred_fallthru
      _
    %v12 = vld [vmem:[%s0] sm:$0xff]
    %v13 = vld [vmem:[%s0 + $0x8] sm:$0xff]
    %v14 = vld [vmem:[%s0 + $0x10] sm:$0xff]
    %v15 = vld [vmem:[%s0 + $0x18] sm:$0xff]
    %v16 = vld [vmem:[%s0 + $0x20] sm:$0xff]
    %v17 = vld [vmem:[%s0 + $0x28] sm:$0xff]
    %v18 = vld [vmem:[%s0 + $0x30] sm:$0xff]
    %v19 = vld [vmem:[%s0 + $0x38] sm:$0xff]
    %v20 = vld [vmem:[%s1] sm:$0x7]
    %22 = vset.pattern.permute.xlu0 0
    %23 = vperm.xlu0 %22, %v12
    %v24 = vpop.permute.xlu0 %23
    %27 = vset.pattern.permute.xlu0 0
    %28 = vperm.xlu0 %27, %v13
    %v29 = vpop.permute.xlu0 %28
    %32 = vset.pattern.permute.xlu0 0
    %33 = vperm.xlu0 %32, %v14
    %v34 = vpop.permute.xlu0 %33
    %37 = vset.pattern.permute.xlu0 0
    %38 = vperm.xlu0 %37, %v15
    %v39 = vpop.permute.xlu0 %38
    %42 = vset.pattern.permute.xlu0 0
    %43 = vperm.xlu0 %42, %v16
    %v44 = vpop.permute.xlu0 %43
    %47 = vset.pattern.permute.xlu0 0
    %48 = vperm.xlu0 %47, %v17
    %v49 = vpop.permute.xlu0 %48
    %52 = vset.pattern.permute.xlu0 0
    %53 = vperm.xlu0 %52, %v18
    %v54 = vpop.permute.xlu0 %53
    %57 = vset.pattern.permute.xlu0 0
    %58 = vperm.xlu0 %57, %v19
    %v59 = vpop.permute.xlu0 %58
    %vm61 = vcmp.eq.f32.partialorder %v20, 1.0
    %v62 = vsel %vm61, 1, 0
    %v63 = vperm.slane %v62, 2
    %vm64 = vcmp.eq.s32.totalorder %v63, 1
    %65 = vset.pattern.permute.xlu0 1
    %66 = vperm.xlu0 %65, %v12
    %v67 = vpop.permute.xlu0 %66
    %69 = vset.pattern.permute.xlu0 1
    %70 = vperm.xlu0 %69, %v13
    %v71 = vpop.permute.xlu0 %70
    %73 = vset.pattern.permute.xlu0 1
    %74 = vperm.xlu0 %73, %v14
    %v75 = vpop.permute.xlu0 %74
    %77 = vset.pattern.permute.xlu0 1
    %78 = vperm.xlu0 %77, %v15
    %v79 = vpop.permute.xlu0 %78
    %81 = vset.pattern.permute.xlu0 1
    %82 = vperm.xlu0 %81, %v16
    %v83 = vpop.permute.xlu0 %82
    %85 = vset.pattern.permute.xlu0 1
    %86 = vperm.xlu0 %85, %v17
    %v87 = vpop.permute.xlu0 %86
    %89 = vset.pattern.permute.xlu0 1
    %90 = vperm.xlu0 %89, %v18
    %v91 = vpop.permute.xlu0 %90
    %93 = vset.pattern.permute.xlu0 1
    %94 = vperm.xlu0 %93, %v19
    %v95 = vpop.permute.xlu0 %94
    %v97 = vsel %vm64, %v67, %v24
    %v98 = vsel %vm64, %v71, %v29
    %v99 = vsel %vm64, %v75, %v34
    %v100 = vsel %vm64, %v79, %v39
    %v101 = vsel %vm64, %v83, %v44
    %v102 = vsel %vm64, %v87, %v49
    %v103 = vsel %vm64, %v91, %v54
    %v104 = vsel %vm64, %v95, %v59
    %vm105 = vcmp.eq.f32.partialorder %v20, 2.0
    %v106 = vsel %vm105, 1, 0
    %v107 = vperm.slane %v106, 2
    %vm108 = vcmp.eq.s32.totalorder %v107, 1
    %109 = vset.pattern.permute.xlu0 2
    %110 = vperm.xlu0 %109, %v12
    %v111 = vpop.permute.xlu0 %110
    %113 = vset.pattern.permute.xlu0 2
    %114 = vperm.xlu0 %113, %v13
    %v115 = vpop.permute.xlu0 %114
    %117 = vset.pattern.permute.xlu0 2
    %118 = vperm.xlu0 %117, %v14
    %v119 = vpop.permute.xlu0 %118
    %121 = vset.pattern.permute.xlu0 2
    %122 = vperm.xlu0 %121, %v15
    %v123 = vpop.permute.xlu0 %122
    %125 = vset.pattern.permute.xlu0 2
    %126 = vperm.xlu0 %125, %v16
    %v127 = vpop.permute.xlu0 %126
    %129 = vset.pattern.permute.xlu0 2
    %130 = vperm.xlu0 %129, %v17
    %v131 = vpop.permute.xlu0 %130
    %133 = vset.pattern.permute.xlu0 2
    %134 = vperm.xlu0 %133, %v18
    %v135 = vpop.permute.xlu0 %134
    %137 = vset.pattern.permute.xlu0 2
    %138 = vperm.xlu0 %137, %v19
    %v139 = vpop.permute.xlu0 %138
    %v141 = vsel %vm108, %v111, %v97
    %v142 = vsel %vm108, %v115, %v98
    %v143 = vsel %vm108, %v119, %v99
    %v144 = vsel %vm108, %v123, %v100
    %v145 = vsel %vm108, %v127, %v101
    %v146 = vsel %vm108, %v131, %v102
    %v147 = vsel %vm108, %v135, %v103
    %v148 = vsel %vm108, %v139, %v104
    %vm149 = vcmp.eq.f32.partialorder %v20, 3.0
    %v150 = vsel %vm149, 1, 0
    %v151 = vperm.slane %v150, 2
    %vm152 = vcmp.eq.s32.totalorder %v151, 1
    %153 = vset.pattern.permute.xlu0 3
    %154 = vperm.xlu0 %153, %v12
    %v155 = vpop.permute.xlu0 %154
    %157 = vset.pattern.permute.xlu0 3
    %158 = vperm.xlu0 %157, %v13
    %v159 = vpop.permute.xlu0 %158
    %161 = vset.pattern.permute.xlu0 3
    %162 = vperm.xlu0 %161, %v14
    %v163 = vpop.permute.xlu0 %162
    %165 = vset.pattern.permute.xlu0 3
    %166 = vperm.xlu0 %165, %v15
    %v167 = vpop.permute.xlu0 %166
    %169 = vset.pattern.permute.xlu0 3
    %170 = vperm.xlu0 %169, %v16
    %v171 = vpop.permute.xlu0 %170
    %173 = vset.pattern.permute.xlu0 3
    %174 = vperm.xlu0 %173, %v17
    %v175 = vpop.permute.xlu0 %174
    %177 = vset.pattern.permute.xlu0 3
    %178 = vperm.xlu0 %177, %v18
    %v179 = vpop.permute.xlu0 %178
    %181 = vset.pattern.permute.xlu0 3
    %182 = vperm.xlu0 %181, %v19
    %v183 = vpop.permute.xlu0 %182
    %v185 = vsel %vm152, %v155, %v141
    %v186 = vsel %vm152, %v159, %v142
    %v187 = vsel %vm152, %v163, %v143
    %v188 = vsel %vm152, %v167, %v144
    %v189 = vsel %vm152, %v171, %v145
    %v190 = vsel %vm152, %v175, %v146
    %v191 = vsel %vm152, %v179, %v147
    %v192 = vsel %vm152, %v183, %v148
    %v193 = vmul.f32 %v185, 0.62831855
    %v194 = vmul.f32 %v186, 0.62831855
    %v195 = vmul.f32 %v187, 0.62831855
    %v196 = vmul.f32 %v188, 0.62831855
    %v197 = vmul.f32 %v189, 0.62831855
    %v198 = vmul.f32 %v190, 0.62831855
    %v199 = vmul.f32 %v191, 0.62831855
    %v200 = vmul.f32 %v192, 0.62831855
    %v201 = vand.u32 2147483647, %v193
    %vm202 = vcmp.le.f32.partialorder %v201, 0.7853982
    %vm203 = vcmp.lt.s32.totalorder %v193, 0
    %v204 = vand.u32 %v193, 2139095040
    %v205 = vshrl.u32 %v204, 23
    %v206 = vsub.s32 %v205, 127
    %v207 = vand.u32 2147483647, %v193
    %v208 = vand.u32 %v207, 8388607
    %v209 = vor.u32 %v208, 8388608
    %v210 = vsub.s32 0, %v209
    %v211 = vadd.s32 %v206, 1
    %vm212 = vcmp.gt.s32.totalorder %v211, 0
    %v213 = vsel %vm212, %v211, 0
    %v214 = vshrl.u32 %v213, 5
    %v215 = vand.u32 %v213, 31
    %v216 = vsub.s32 32, %v215
    %v217 = vshrl.u32 683565275, %v216
    %v218 = vshll.u32 683565275, %v215
    %v219 = vshrl.u32 2475754826, %v216
    %v220 = vor.u32 %v218, %v219
    %v221 = vshll.u32 2475754826, %v215
    %v222 = vshrl.u32 2131351028, %v216
    %v223 = vor.u32 %v221, %v222
    %v224 = vshll.u32 2131351028, %v215
    %v225 = vshrl.u32 2102212464, %v216
    %v226 = vor.u32 %v224, %v225
    %v227 = vshll.u32 2102212464, %v215
    %v228 = vshrl.u32 920167782, %v216
    %v229 = vor.u32 %v227, %v228
    %v230 = vshll.u32 920167782, %v215
    %v231 = vshrl.u32 1326507024, %v216
    %v232 = vor.u32 %v230, %v231
    %vm233 = vcmp.lt.s32.totalorder %v214, 1
    %vm234 = vcmp.lt.s32.totalorder %v214, 2
    %vm235 = vcmp.lt.s32.totalorder %v214, 3
    %vm236 = vcmp.lt.s32.totalorder %v214, 4
    %v237 = vsel %vm233, %v217, %v220
    %v238 = vsel %vm236, %v226, 2102212464
    %v239 = vsel %vm235, %v223, %v238
    %v240 = vsel %vm234, %v237, %v239
    %v241 = vsel %vm233, %v220, %v223
    %v242 = vsel %vm236, %v229, 920167782
    %v243 = vsel %vm235, %v226, %v242
    %v244 = vsel %vm234, %v241, %v243
    %v245 = vsel %vm233, %v223, %v226
    %v246 = vsel %vm236, %v232, 1326507024
    %v247 = vsel %vm235, %v229, %v246
    %v248 = vsel %vm234, %v245, %v247
    %v249 = vshll.u32 %v209, 8
    %v250 = vand.u32 %v249, 65535
    %v251 = vshrl.u32 %v249, 16
    %v252 = vand.u32 %v248, 65535
    %v253 = vshrl.u32 %v248, 16
    %v254 = vmul.u32 %v250, %v252
    %v255 = vmul.u32 %v250, %v253
    %v256 = vmul.u32 %v251, %v252
    %v257 = vmul.u32 %v251, %v253
    %v258 = vshll.u32 %v255, 16
    %v259 = vshrl.u32 %v255, 16
    %v260 = vshll.u32 %v256, 16
    %v261 = vshrl.u32 %v256, 16
    %vm262 = vc.u32 %v254, %v258
    %v263 = vsel %vm262, 1, 0
    %v264 = vadd.s32 %v254, %v258
    %v265 = vadd.s32 %v257, %v263
    %vm266 = vc.u32 %v264, %v260
    %v267 = vsel %vm266, 1, 0
    %v268 = vadd.s32 %v264, %v260
    %v269 = vadd.s32 %v265, %v267
    %v270 = vadd.s32 %v269, %v259
    %v271 = vadd.s32 %v270, %v261
    %v272 = vand.u32 %v249, 65535
    %v273 = vshrl.u32 %v249, 16
    %v274 = vand.u32 %v244, 65535
    %v275 = vshrl.u32 %v244, 16
    %v276 = vmul.u32 %v272, %v274
    %v277 = vmul.u32 %v272, %v275
    %v278 = vmul.u32 %v273, %v274
    %v279 = vmul.u32 %v273, %v275
    %v280 = vshll.u32 %v277, 16
    %v281 = vshrl.u32 %v277, 16
    %v282 = vshll.u32 %v278, 16
    %v283 = vshrl.u32 %v278, 16
    %vm284 = vc.u32 %v276, %v280
    %v285 = vsel %vm284, 1, 0
    %v286 = vadd.s32 %v276, %v280
    %v287 = vadd.s32 %v279, %v285
    %vm288 = vc.u32 %v286, %v282
    %v289 = vsel %vm288, 1, 0
    %v290 = vadd.s32 %v286, %v282
    %v291 = vadd.s32 %v287, %v289
    %v292 = vadd.s32 %v291, %v281
    %v293 = vadd.s32 %v292, %v283
    %v294 = vmul.u32 %v249, %v240
    %v295 = vadd.s32 %v271, %v290
    %vm296 = vc.u32 %v271, %v290
    %v297 = vadd.s32 %v293, 1
    %v298 = vsel %vm296, %v297, %v293
    %v299 = vadd.s32 %v294, %v298
    %v300 = vadd.s32 %v299, 536870912
    %v301 = vshrl.u32 %v300, 30
    %v302 = vshll.u32 %v301, 30
    %v303 = vsub.s32 %v299, %v302
    %vm304 = vcmp.lt.s32.totalorder %v303, 0
    %v305 = vsub.s32 0, %v303
    %v306 = vsel %vm304, %v305, %v303
    %v307 = vclz %v306
    %v308 = vsub.s32 %v307, 2
    %vm309 = vcmp.gt.s32.totalorder 0, %v308
    %v310 = vsel %vm309, 0, %v308
    %v311 = vsub.s32 32, %v310
    %v312 = vshll.u32 %v303, %v310
    %v313 = vshrl.u32 %v295, %v311
    %v314 = vor.u32 %v312, %v313
    %v315 = vsub.s32 4294967266, %v310
    %v316 = vadd.s32 %v315, 127
    %v317 = vshll.u32 %v316, 23
    %v318 = vor.u32 4788187, %v317
    %v319 = vand.u32 2147483647, %v318
    %v321 = vcvt.s32.f32 %v314
    %v322 = vmul.f32 %v321, %v319
    %v323 = vxor.u32 %v322, 2147483648
    %v324 = vsel %vm203, %v323, %v322
    %v325 = vsub.s32 4, %v301
    %v326 = vsel %vm203, %v325, %v301
    %v327 = vsel %vm202, %v193, %v324
    %v328 = vsel %vm202, 0, %v326
    %v329 = vmul.f32 %v327, %v327
    %v330 = vmul.f32 %v329, -0.001358992
    %v331 = vadd.f32 %v330, 0.041655596
    %v332 = vmul.f32 %v329, %v331
    %v333 = vadd.f32 %v332, -0.4999988
    %v334 = vmul.f32 %v329, %v333
    %v335 = vadd.f32 1.0, %v334
    %v336 = vmul.f32 %v327, %v327
    %v337 = vmul.f32 %v336, -0.00019511016
    %v338 = vadd.f32 %v337, 0.008332121
    %v339 = vmul.f32 %v336, %v338
    %v340 = vadd.f32 %v339, -0.16666654
    %v341 = vmul.f32 %v336, %v340
    %v342 = vadd.f32 %v341, 1.0
    %v343 = vmul.f32 %v342, %v327
    %vm344 = vweird.f32 %v193
    %v345 = vand.u32 %v328, 3
    %vm346 = vcmp.lt.s32.totalorder %v345, 2
    %vm347 = vcmp.eq.s32.totalorder %v345, 0
    %v348 = vxor.u32 %v343, 2147483648
    %v349 = vsel %vm347, %v335, %v348
    %vm350 = vcmp.eq.s32.totalorder %v345, 2
    %v351 = vxor.u32 %v335, 2147483648
    %v352 = vsel %vm350, %v351, %v343
    %v353 = vsel %vm346, %v349, %v352
    %v354 = vsel %vm344, nan, %v353
    %v355 = vand.u32 2147483647, %v194
    %vm356 = vcmp.le.f32.partialorder %v355, 0.7853982
    %vm357 = vcmp.lt.s32.totalorder %v194, 0
    %v358 = vand.u32 %v194, 2139095040
    %v359 = vshrl.u32 %v358, 23
    %v360 = vsub.s32 %v359, 127
    %v361 = vand.u32 2147483647, %v194
    %v362 = vand.u32 %v361, 8388607
    %v363 = vor.u32 %v362, 8388608
    %v364 = vsub.s32 0, %v363
    %v365 = vadd.s32 %v360, 1
    %vm366 = vcmp.gt.s32.totalorder %v365, 0
    %v367 = vsel %vm366, %v365, 0
    %v368 = vshrl.u32 %v367, 5
    %v369 = vand.u32 %v367, 31
    %v370 = vsub.s32 32, %v369
    %v371 = vshrl.u32 683565275, %v370
    %v372 = vshll.u32 683565275, %v369
    %v373 = vshrl.u32 2475754826, %v370
    %v374 = vor.u32 %v372, %v373
    %v375 = vshll.u32 2475754826, %v369
    %v376 = vshrl.u32 2131351028, %v370
    %v377 = vor.u32 %v375, %v376
    %v378 = vshll.u32 2131351028, %v369
    %v379 = vshrl.u32 2102212464, %v370
    %v380 = vor.u32 %v378, %v379
    %v381 = vshll.u32 2102212464, %v369
    %v382 = vshrl.u32 920167782, %v370
    %v383 = vor.u32 %v381, %v382
    %v384 = vshll.u32 920167782, %v369
    %v385 = vshrl.u32 1326507024, %v370
    %v386 = vor.u32 %v384, %v385
    %vm387 = vcmp.lt.s32.totalorder %v368, 1
    %vm388 = vcmp.lt.s32.totalorder %v368, 2
    %vm389 = vcmp.lt.s32.totalorder %v368, 3
    %vm390 = vcmp.lt.s32.totalorder %v368, 4
    %v391 = vsel %vm387, %v371, %v374
    %v392 = vsel %vm390, %v380, 2102212464
    %v393 = vsel %vm389, %v377, %v392
    %v394 = vsel %vm388, %v391, %v393
    %v395 = vsel %vm387, %v374, %v377
    %v396 = vsel %vm390, %v383, 920167782
    %v397 = vsel %vm389, %v380, %v396
    %v398 = vsel %vm388, %v395, %v397
    %v399 = vsel %vm387, %v377, %v380
    %v400 = vsel %vm390, %v386, 1326507024
    %v401 = vsel %vm389, %v383, %v400
    %v402 = vsel %vm388, %v399, %v401
    %v403 = vshll.u32 %v363, 8
    %v404 = vand.u32 %v403, 65535
    %v405 = vshrl.u32 %v403, 16
    %v406 = vand.u32 %v402, 65535
    %v407 = vshrl.u32 %v402, 16
    %v408 = vmul.u32 %v404, %v406
    %v409 = vmul.u32 %v404, %v407
    %v410 = vmul.u32 %v405, %v406
    %v411 = vmul.u32 %v405, %v407
    %v412 = vshll.u32 %v409, 16
    %v413 = vshrl.u32 %v409, 16
    %v414 = vshll.u32 %v410, 16
    %v415 = vshrl.u32 %v410, 16
    %vm416 = vc.u32 %v408, %v412
    %v417 = vsel %vm416, 1, 0
    %v418 = vadd.s32 %v408, %v412
    %v419 = vadd.s32 %v411, %v417
    %vm420 = vc.u32 %v418, %v414
    %v421 = vsel %vm420, 1, 0
    %v422 = vadd.s32 %v418, %v414
    %v423 = vadd.s32 %v419, %v421
    %v424 = vadd.s32 %v423, %v413
    %v425 = vadd.s32 %v424, %v415
    %v426 = vand.u32 %v403, 65535
    %v427 = vshrl.u32 %v403, 16
    %v428 = vand.u32 %v398, 65535
    %v429 = vshrl.u32 %v398, 16
    %v430 = vmul.u32 %v426, %v428
    %v431 = vmul.u32 %v426, %v429
    %v432 = vmul.u32 %v427, %v428
    %v433 = vmul.u32 %v427, %v429
    %v434 = vshll.u32 %v431, 16
    %v435 = vshrl.u32 %v431, 16
    %v436 = vshll.u32 %v432, 16
    %v437 = vshrl.u32 %v432, 16
    %vm438 = vc.u32 %v430, %v434
    %v439 = vsel %vm438, 1, 0
    %v440 = vadd.s32 %v430, %v434
    %v441 = vadd.s32 %v433, %v439
    %vm442 = vc.u32 %v440, %v436
    %v443 = vsel %vm442, 1, 0
    %v444 = vadd.s32 %v440, %v436
    %v445 = vadd.s32 %v441, %v443
    %v446 = vadd.s32 %v445, %v435
    %v447 = vadd.s32 %v446, %v437
    %v448 = vmul.u32 %v403, %v394
    %v449 = vadd.s32 %v425, %v444
    %vm450 = vc.u32 %v425, %v444
    %v451 = vadd.s32 %v447, 1
    %v452 = vsel %vm450, %v451, %v447
    %v453 = vadd.s32 %v448, %v452
    %v454 = vadd.s32 %v453, 536870912
    %v455 = vshrl.u32 %v454, 30
    %v456 = vshll.u32 %v455, 30
    %v457 = vsub.s32 %v453, %v456
    %vm458 = vcmp.lt.s32.totalorder %v457, 0
    %v459 = vsub.s32 0, %v457
    %v460 = vsel %vm458, %v459, %v457
    %v461 = vclz %v460
    %v462 = vsub.s32 %v461, 2
    %vm463 = vcmp.gt.s32.totalorder 0, %v462
    %v464 = vsel %vm463, 0, %v462
    %v465 = vsub.s32 32, %v464
    %v466 = vshll.u32 %v457, %v464
    %v467 = vshrl.u32 %v449, %v465
    %v468 = vor.u32 %v466, %v467
    %v469 = vsub.s32 4294967266, %v464
    %v470 = vadd.s32 %v469, 127
    %v471 = vshll.u32 %v470, 23
    %v472 = vor.u32 4788187, %v471
    %v473 = vand.u32 2147483647, %v472
    %v475 = vcvt.s32.f32 %v468
    %v476 = vmul.f32 %v475, %v473
    %v477 = vxor.u32 %v476, 2147483648
    %v478 = vsel %vm357, %v477, %v476
    %v479 = vsub.s32 4, %v455
    %v480 = vsel %vm357, %v479, %v455
    %v481 = vsel %vm356, %v194, %v478
    %v482 = vsel %vm356, 0, %v480
    %v483 = vmul.f32 %v481, %v481
    %v484 = vmul.f32 %v483, -0.001358992
    %v485 = vadd.f32 %v484, 0.041655596
    %v486 = vmul.f32 %v483, %v485
    %v487 = vadd.f32 %v486, -0.4999988
    %v488 = vmul.f32 %v483, %v487
    %v489 = vadd.f32 1.0, %v488
    %v490 = vmul.f32 %v481, %v481
    %v491 = vmul.f32 %v490, -0.00019511016
    %v492 = vadd.f32 %v491, 0.008332121
    %v493 = vmul.f32 %v490, %v492
    %v494 = vadd.f32 %v493, -0.16666654
    %v495 = vmul.f32 %v490, %v494
    %v496 = vadd.f32 %v495, 1.0
    %v497 = vmul.f32 %v496, %v481
    %vm498 = vweird.f32 %v194
    %v499 = vand.u32 %v482, 3
    %vm500 = vcmp.lt.s32.totalorder %v499, 2
    %vm501 = vcmp.eq.s32.totalorder %v499, 0
    %v502 = vxor.u32 %v497, 2147483648
    %v503 = vsel %vm501, %v489, %v502
    %vm504 = vcmp.eq.s32.totalorder %v499, 2
    %v505 = vxor.u32 %v489, 2147483648
    %v506 = vsel %vm504, %v505, %v497
    %v507 = vsel %vm500, %v503, %v506
    %v508 = vsel %vm498, nan, %v507
    %v509 = vand.u32 2147483647, %v195
    %vm510 = vcmp.le.f32.partialorder %v509, 0.7853982
    %vm511 = vcmp.lt.s32.totalorder %v195, 0
    %v512 = vand.u32 %v195, 2139095040
    %v513 = vshrl.u32 %v512, 23
    %v514 = vsub.s32 %v513, 127
    %v515 = vand.u32 2147483647, %v195
    %v516 = vand.u32 %v515, 8388607
    %v517 = vor.u32 %v516, 8388608
    %v518 = vsub.s32 0, %v517
    %v519 = vadd.s32 %v514, 1
    %vm520 = vcmp.gt.s32.totalorder %v519, 0
    %v521 = vsel %vm520, %v519, 0
    %v522 = vshrl.u32 %v521, 5
    %v523 = vand.u32 %v521, 31
    %v524 = vsub.s32 32, %v523
    %v525 = vshrl.u32 683565275, %v524
    %v526 = vshll.u32 683565275, %v523
    %v527 = vshrl.u32 2475754826, %v524
    %v528 = vor.u32 %v526, %v527
    %v529 = vshll.u32 2475754826, %v523
    %v530 = vshrl.u32 2131351028, %v524
    %v531 = vor.u32 %v529, %v530
    %v532 = vshll.u32 2131351028, %v523
    %v533 = vshrl.u32 2102212464, %v524
    %v534 = vor.u32 %v532, %v533
    %v535 = vshll.u32 2102212464, %v523
    %v536 = vshrl.u32 920167782, %v524
    %v537 = vor.u32 %v535, %v536
    %v538 = vshll.u32 920167782, %v523
    %v539 = vshrl.u32 1326507024, %v524
    %v540 = vor.u32 %v538, %v539
    %vm541 = vcmp.lt.s32.totalorder %v522, 1
    %vm542 = vcmp.lt.s32.totalorder %v522, 2
    %vm543 = vcmp.lt.s32.totalorder %v522, 3
    %vm544 = vcmp.lt.s32.totalorder %v522, 4
    %v545 = vsel %vm541, %v525, %v528
    %v546 = vsel %vm544, %v534, 2102212464
    %v547 = vsel %vm543, %v531, %v546
    %v548 = vsel %vm542, %v545, %v547
    %v549 = vsel %vm541, %v528, %v531
    %v550 = vsel %vm544, %v537, 920167782
    %v551 = vsel %vm543, %v534, %v550
    %v552 = vsel %vm542, %v549, %v551
    %v553 = vsel %vm541, %v531, %v534
    %v554 = vsel %vm544, %v540, 1326507024
    %v555 = vsel %vm543, %v537, %v554
    %v556 = vsel %vm542, %v553, %v555
    %v557 = vshll.u32 %v517, 8
    %v558 = vand.u32 %v557, 65535
    %v559 = vshrl.u32 %v557, 16
    %v560 = vand.u32 %v556, 65535
    %v561 = vshrl.u32 %v556, 16
    %v562 = vmul.u32 %v558, %v560
    %v563 = vmul.u32 %v558, %v561
    %v564 = vmul.u32 %v559, %v560
    %v565 = vmul.u32 %v559, %v561
    %v566 = vshll.u32 %v563, 16
    %v567 = vshrl.u32 %v563, 16
    %v568 = vshll.u32 %v564, 16
    %v569 = vshrl.u32 %v564, 16
    %vm570 = vc.u32 %v562, %v566
    %v571 = vsel %vm570, 1, 0
    %v572 = vadd.s32 %v562, %v566
    %v573 = vadd.s32 %v565, %v571
    %vm574 = vc.u32 %v572, %v568
    %v575 = vsel %vm574, 1, 0
    %v576 = vadd.s32 %v572, %v568
    %v577 = vadd.s32 %v573, %v575
    %v578 = vadd.s32 %v577, %v567
    %v579 = vadd.s32 %v578, %v569
    %v580 = vand.u32 %v557, 65535
    %v581 = vshrl.u32 %v557, 16
    %v582 = vand.u32 %v552, 65535
    %v583 = vshrl.u32 %v552, 16
    %v584 = vmul.u32 %v580, %v582
    %v585 = vmul.u32 %v580, %v583
    %v586 = vmul.u32 %v581, %v582
    %v587 = vmul.u32 %v581, %v583
    %v588 = vshll.u32 %v585, 16
    %v589 = vshrl.u32 %v585, 16
    %v590 = vshll.u32 %v586, 16
    %v591 = vshrl.u32 %v586, 16
    %vm592 = vc.u32 %v584, %v588
    %v593 = vsel %vm592, 1, 0
    %v594 = vadd.s32 %v584, %v588
    %v595 = vadd.s32 %v587, %v593
    %vm596 = vc.u32 %v594, %v590
    %v597 = vsel %vm596, 1, 0
    %v598 = vadd.s32 %v594, %v590
    %v599 = vadd.s32 %v595, %v597
    %v600 = vadd.s32 %v599, %v589
    %v601 = vadd.s32 %v600, %v591
    %v602 = vmul.u32 %v557, %v548
    %v603 = vadd.s32 %v579, %v598
    %vm604 = vc.u32 %v579, %v598
    %v605 = vadd.s32 %v601, 1
    %v606 = vsel %vm604, %v605, %v601
    %v607 = vadd.s32 %v602, %v606
    %v608 = vadd.s32 %v607, 536870912
    %v609 = vshrl.u32 %v608, 30
    %v610 = vshll.u32 %v609, 30
    %v611 = vsub.s32 %v607, %v610
    %vm612 = vcmp.lt.s32.totalorder %v611, 0
    %v613 = vsub.s32 0, %v611
    %v614 = vsel %vm612, %v613, %v611
    %v615 = vclz %v614
    %v616 = vsub.s32 %v615, 2
    %vm617 = vcmp.gt.s32.totalorder 0, %v616
    %v618 = vsel %vm617, 0, %v616
    %v619 = vsub.s32 32, %v618
    %v620 = vshll.u32 %v611, %v618
    %v621 = vshrl.u32 %v603, %v619
    %v622 = vor.u32 %v620, %v621
    %v623 = vsub.s32 4294967266, %v618
    %v624 = vadd.s32 %v623, 127
    %v625 = vshll.u32 %v624, 23
    %v626 = vor.u32 4788187, %v625
    %v627 = vand.u32 2147483647, %v626
    %v629 = vcvt.s32.f32 %v622
    %v630 = vmul.f32 %v629, %v627
    %v631 = vxor.u32 %v630, 2147483648
    %v632 = vsel %vm511, %v631, %v630
    %v633 = vsub.s32 4, %v609
    %v634 = vsel %vm511, %v633, %v609
    %v635 = vsel %vm510, %v195, %v632
    %v636 = vsel %vm510, 0, %v634
    %v637 = vmul.f32 %v635, %v635
    %v638 = vmul.f32 %v637, -0.001358992
    %v639 = vadd.f32 %v638, 0.041655596
    %v640 = vmul.f32 %v637, %v639
    %v641 = vadd.f32 %v640, -0.4999988
    %v642 = vmul.f32 %v637, %v641
    %v643 = vadd.f32 1.0, %v642
    %v644 = vmul.f32 %v635, %v635
    %v645 = vmul.f32 %v644, -0.00019511016
    %v646 = vadd.f32 %v645, 0.008332121
    %v647 = vmul.f32 %v644, %v646
    %v648 = vadd.f32 %v647, -0.16666654
    %v649 = vmul.f32 %v644, %v648
    %v650 = vadd.f32 %v649, 1.0
    %v651 = vmul.f32 %v650, %v635
    %vm652 = vweird.f32 %v195
    %v653 = vand.u32 %v636, 3
    %vm654 = vcmp.lt.s32.totalorder %v653, 2
    %vm655 = vcmp.eq.s32.totalorder %v653, 0
    %v656 = vxor.u32 %v651, 2147483648
    %v657 = vsel %vm655, %v643, %v656
    %vm658 = vcmp.eq.s32.totalorder %v653, 2
    %v659 = vxor.u32 %v643, 2147483648
    %v660 = vsel %vm658, %v659, %v651
    %v661 = vsel %vm654, %v657, %v660
    %v662 = vsel %vm652, nan, %v661
    %v663 = vand.u32 2147483647, %v196
    %vm664 = vcmp.le.f32.partialorder %v663, 0.7853982
    %vm665 = vcmp.lt.s32.totalorder %v196, 0
    %v666 = vand.u32 %v196, 2139095040
    %v667 = vshrl.u32 %v666, 23
    %v668 = vsub.s32 %v667, 127
    %v669 = vand.u32 2147483647, %v196
    %v670 = vand.u32 %v669, 8388607
    %v671 = vor.u32 %v670, 8388608
    %v672 = vsub.s32 0, %v671
    %v673 = vadd.s32 %v668, 1
    %vm674 = vcmp.gt.s32.totalorder %v673, 0
    %v675 = vsel %vm674, %v673, 0
    %v676 = vshrl.u32 %v675, 5
    %v677 = vand.u32 %v675, 31
    %v678 = vsub.s32 32, %v677
    %v679 = vshrl.u32 683565275, %v678
    %v680 = vshll.u32 683565275, %v677
    %v681 = vshrl.u32 2475754826, %v678
    %v682 = vor.u32 %v680, %v681
    %v683 = vshll.u32 2475754826, %v677
    %v684 = vshrl.u32 2131351028, %v678
    %v685 = vor.u32 %v683, %v684
    %v686 = vshll.u32 2131351028, %v677
    %v687 = vshrl.u32 2102212464, %v678
    %v688 = vor.u32 %v686, %v687
    %v689 = vshll.u32 2102212464, %v677
    %v690 = vshrl.u32 920167782, %v678
    %v691 = vor.u32 %v689, %v690
    %v692 = vshll.u32 920167782, %v677
    %v693 = vshrl.u32 1326507024, %v678
    %v694 = vor.u32 %v692, %v693
    %vm695 = vcmp.lt.s32.totalorder %v676, 1
    %vm696 = vcmp.lt.s32.totalorder %v676, 2
    %vm697 = vcmp.lt.s32.totalorder %v676, 3
    %vm698 = vcmp.lt.s32.totalorder %v676, 4
    %v699 = vsel %vm695, %v679, %v682
    %v700 = vsel %vm698, %v688, 2102212464
    %v701 = vsel %vm697, %v685, %v700
    %v702 = vsel %vm696, %v699, %v701
    %v703 = vsel %vm695, %v682, %v685
    %v704 = vsel %vm698, %v691, 920167782
    %v705 = vsel %vm697, %v688, %v704
    %v706 = vsel %vm696, %v703, %v705
    %v707 = vsel %vm695, %v685, %v688
    %v708 = vsel %vm698, %v694, 1326507024
    %v709 = vsel %vm697, %v691, %v708
    %v710 = vsel %vm696, %v707, %v709
    %v711 = vshll.u32 %v671, 8
    %v712 = vand.u32 %v711, 65535
    %v713 = vshrl.u32 %v711, 16
    %v714 = vand.u32 %v710, 65535
    %v715 = vshrl.u32 %v710, 16
    %v716 = vmul.u32 %v712, %v714
    %v717 = vmul.u32 %v712, %v715
    %v718 = vmul.u32 %v713, %v714
    %v719 = vmul.u32 %v713, %v715
    %v720 = vshll.u32 %v717, 16
    %v721 = vshrl.u32 %v717, 16
    %v722 = vshll.u32 %v718, 16
    %v723 = vshrl.u32 %v718, 16
    %vm724 = vc.u32 %v716, %v720
    %v725 = vsel %vm724, 1, 0
    %v726 = vadd.s32 %v716, %v720
    %v727 = vadd.s32 %v719, %v725
    %vm728 = vc.u32 %v726, %v722
    %v729 = vsel %vm728, 1, 0
    %v730 = vadd.s32 %v726, %v722
    %v731 = vadd.s32 %v727, %v729
    %v732 = vadd.s32 %v731, %v721
    %v733 = vadd.s32 %v732, %v723
    %v734 = vand.u32 %v711, 65535
    %v735 = vshrl.u32 %v711, 16
    %v736 = vand.u32 %v706, 65535
    %v737 = vshrl.u32 %v706, 16
    %v738 = vmul.u32 %v734, %v736
    %v739 = vmul.u32 %v734, %v737
    %v740 = vmul.u32 %v735, %v736
    %v741 = vmul.u32 %v735, %v737
    %v742 = vshll.u32 %v739, 16
    %v743 = vshrl.u32 %v739, 16
    %v744 = vshll.u32 %v740, 16
    %v745 = vshrl.u32 %v740, 16
    %vm746 = vc.u32 %v738, %v742
    %v747 = vsel %vm746, 1, 0
    %v748 = vadd.s32 %v738, %v742
    %v749 = vadd.s32 %v741, %v747
    %vm750 = vc.u32 %v748, %v744
    %v751 = vsel %vm750, 1, 0
    %v752 = vadd.s32 %v748, %v744
    %v753 = vadd.s32 %v749, %v751
    %v754 = vadd.s32 %v753, %v743
    %v755 = vadd.s32 %v754, %v745
    %v756 = vmul.u32 %v711, %v702
    %v757 = vadd.s32 %v733, %v752
    %vm758 = vc.u32 %v733, %v752
    %v759 = vadd.s32 %v755, 1
    %v760 = vsel %vm758, %v759, %v755
    %v761 = vadd.s32 %v756, %v760
    %v762 = vadd.s32 %v761, 536870912
    %v763 = vshrl.u32 %v762, 30
    %v764 = vshll.u32 %v763, 30
    %v765 = vsub.s32 %v761, %v764
    %vm766 = vcmp.lt.s32.totalorder %v765, 0
    %v767 = vsub.s32 0, %v765
    %v768 = vsel %vm766, %v767, %v765
    %v769 = vclz %v768
    %v770 = vsub.s32 %v769, 2
    %vm771 = vcmp.gt.s32.totalorder 0, %v770
    %v772 = vsel %vm771, 0, %v770
    %v773 = vsub.s32 32, %v772
    %v774 = vshll.u32 %v765, %v772
    %v775 = vshrl.u32 %v757, %v773
    %v776 = vor.u32 %v774, %v775
    %v777 = vsub.s32 4294967266, %v772
    %v778 = vadd.s32 %v777, 127
    %v779 = vshll.u32 %v778, 23
    %v780 = vor.u32 4788187, %v779
    %v781 = vand.u32 2147483647, %v780
    %v783 = vcvt.s32.f32 %v776
    %v784 = vmul.f32 %v783, %v781
    %v785 = vxor.u32 %v784, 2147483648
    %v786 = vsel %vm665, %v785, %v784
    %v787 = vsub.s32 4, %v763
    %v788 = vsel %vm665, %v787, %v763
    %v789 = vsel %vm664, %v196, %v786
    %v790 = vsel %vm664, 0, %v788
    %v791 = vmul.f32 %v789, %v789
    %v792 = vmul.f32 %v791, -0.001358992
    %v793 = vadd.f32 %v792, 0.041655596
    %v794 = vmul.f32 %v791, %v793
    %v795 = vadd.f32 %v794, -0.4999988
    %v796 = vmul.f32 %v791, %v795
    %v797 = vadd.f32 1.0, %v796
    %v798 = vmul.f32 %v789, %v789
    %v799 = vmul.f32 %v798, -0.00019511016
    %v800 = vadd.f32 %v799, 0.008332121
    %v801 = vmul.f32 %v798, %v800
    %v802 = vadd.f32 %v801, -0.16666654
    %v803 = vmul.f32 %v798, %v802
    %v804 = vadd.f32 %v803, 1.0
    %v805 = vmul.f32 %v804, %v789
    %vm806 = vweird.f32 %v196
    %v807 = vand.u32 %v790, 3
    %vm808 = vcmp.lt.s32.totalorder %v807, 2
    %vm809 = vcmp.eq.s32.totalorder %v807, 0
    %v810 = vxor.u32 %v805, 2147483648
    %v811 = vsel %vm809, %v797, %v810
    %vm812 = vcmp.eq.s32.totalorder %v807, 2
    %v813 = vxor.u32 %v797, 2147483648
    %v814 = vsel %vm812, %v813, %v805
    %v815 = vsel %vm808, %v811, %v814
    %v816 = vsel %vm806, nan, %v815
    %v817 = vand.u32 2147483647, %v197
    %vm818 = vcmp.le.f32.partialorder %v817, 0.7853982
    %vm819 = vcmp.lt.s32.totalorder %v197, 0
    %v820 = vand.u32 %v197, 2139095040
    %v821 = vshrl.u32 %v820, 23
    %v822 = vsub.s32 %v821, 127
    %v823 = vand.u32 2147483647, %v197
    %v824 = vand.u32 %v823, 8388607
    %v825 = vor.u32 %v824, 8388608
    %v826 = vsub.s32 0, %v825
    %v827 = vadd.s32 %v822, 1
    %vm828 = vcmp.gt.s32.totalorder %v827, 0
    %v829 = vsel %vm828, %v827, 0
    %v830 = vshrl.u32 %v829, 5
    %v831 = vand.u32 %v829, 31
    %v832 = vsub.s32 32, %v831
    %v833 = vshrl.u32 683565275, %v832
    %v834 = vshll.u32 683565275, %v831
    %v835 = vshrl.u32 2475754826, %v832
    %v836 = vor.u32 %v834, %v835
    %v837 = vshll.u32 2475754826, %v831
    %v838 = vshrl.u32 2131351028, %v832
    %v839 = vor.u32 %v837, %v838
    %v840 = vshll.u32 2131351028, %v831
    %v841 = vshrl.u32 2102212464, %v832
    %v842 = vor.u32 %v840, %v841
    %v843 = vshll.u32 2102212464, %v831
    %v844 = vshrl.u32 920167782, %v832
    %v845 = vor.u32 %v843, %v844
    %v846 = vshll.u32 920167782, %v831
    %v847 = vshrl.u32 1326507024, %v832
    %v848 = vor.u32 %v846, %v847
    %vm849 = vcmp.lt.s32.totalorder %v830, 1
    %vm850 = vcmp.lt.s32.totalorder %v830, 2
    %vm851 = vcmp.lt.s32.totalorder %v830, 3
    %vm852 = vcmp.lt.s32.totalorder %v830, 4
    %v853 = vsel %vm849, %v833, %v836
    %v854 = vsel %vm852, %v842, 2102212464
    %v855 = vsel %vm851, %v839, %v854
    %v856 = vsel %vm850, %v853, %v855
    %v857 = vsel %vm849, %v836, %v839
    %v858 = vsel %vm852, %v845, 920167782
    %v859 = vsel %vm851, %v842, %v858
    %v860 = vsel %vm850, %v857, %v859
    %v861 = vsel %vm849, %v839, %v842
    %v862 = vsel %vm852, %v848, 1326507024
    %v863 = vsel %vm851, %v845, %v862
    %v864 = vsel %vm850, %v861, %v863
    %v865 = vshll.u32 %v825, 8
    %v866 = vand.u32 %v865, 65535
    %v867 = vshrl.u32 %v865, 16
    %v868 = vand.u32 %v864, 65535
    %v869 = vshrl.u32 %v864, 16
    %v870 = vmul.u32 %v866, %v868
    %v871 = vmul.u32 %v866, %v869
    %v872 = vmul.u32 %v867, %v868
    %v873 = vmul.u32 %v867, %v869
    %v874 = vshll.u32 %v871, 16
    %v875 = vshrl.u32 %v871, 16
    %v876 = vshll.u32 %v872, 16
    %v877 = vshrl.u32 %v872, 16
    %vm878 = vc.u32 %v870, %v874
    %v879 = vsel %vm878, 1, 0
    %v880 = vadd.s32 %v870, %v874
    %v881 = vadd.s32 %v873, %v879
    %vm882 = vc.u32 %v880, %v876
    %v883 = vsel %vm882, 1, 0
    %v884 = vadd.s32 %v880, %v876
    %v885 = vadd.s32 %v881, %v883
    %v886 = vadd.s32 %v885, %v875
    %v887 = vadd.s32 %v886, %v877
    %v888 = vand.u32 %v865, 65535
    %v889 = vshrl.u32 %v865, 16
    %v890 = vand.u32 %v860, 65535
    %v891 = vshrl.u32 %v860, 16
    %v892 = vmul.u32 %v888, %v890
    %v893 = vmul.u32 %v888, %v891
    %v894 = vmul.u32 %v889, %v890
    %v895 = vmul.u32 %v889, %v891
    %v896 = vshll.u32 %v893, 16
    %v897 = vshrl.u32 %v893, 16
    %v898 = vshll.u32 %v894, 16
    %v899 = vshrl.u32 %v894, 16
    %vm900 = vc.u32 %v892, %v896
    %v901 = vsel %vm900, 1, 0
    %v902 = vadd.s32 %v892, %v896
    %v903 = vadd.s32 %v895, %v901
    %vm904 = vc.u32 %v902, %v898
    %v905 = vsel %vm904, 1, 0
    %v906 = vadd.s32 %v902, %v898
    %v907 = vadd.s32 %v903, %v905
    %v908 = vadd.s32 %v907, %v897
    %v909 = vadd.s32 %v908, %v899
    %v910 = vmul.u32 %v865, %v856
    %v911 = vadd.s32 %v887, %v906
    %vm912 = vc.u32 %v887, %v906
    %v913 = vadd.s32 %v909, 1
    %v914 = vsel %vm912, %v913, %v909
    %v915 = vadd.s32 %v910, %v914
    %v916 = vadd.s32 %v915, 536870912
    %v917 = vshrl.u32 %v916, 30
    %v918 = vshll.u32 %v917, 30
    %v919 = vsub.s32 %v915, %v918
    %vm920 = vcmp.lt.s32.totalorder %v919, 0
    %v921 = vsub.s32 0, %v919
    %v922 = vsel %vm920, %v921, %v919
    %v923 = vclz %v922
    %v924 = vsub.s32 %v923, 2
    %vm925 = vcmp.gt.s32.totalorder 0, %v924
    %v926 = vsel %vm925, 0, %v924
    %v927 = vsub.s32 32, %v926
    %v928 = vshll.u32 %v919, %v926
    %v929 = vshrl.u32 %v911, %v927
    %v930 = vor.u32 %v928, %v929
    %v931 = vsub.s32 4294967266, %v926
    %v932 = vadd.s32 %v931, 127
    %v933 = vshll.u32 %v932, 23
    %v934 = vor.u32 4788187, %v933
    %v935 = vand.u32 2147483647, %v934
    %v937 = vcvt.s32.f32 %v930
    %v938 = vmul.f32 %v937, %v935
    %v939 = vxor.u32 %v938, 2147483648
    %v940 = vsel %vm819, %v939, %v938
    %v941 = vsub.s32 4, %v917
    %v942 = vsel %vm819, %v941, %v917
    %v943 = vsel %vm818, %v197, %v940
    %v944 = vsel %vm818, 0, %v942
    %v945 = vmul.f32 %v943, %v943
    %v946 = vmul.f32 %v945, -0.001358992
    %v947 = vadd.f32 %v946, 0.041655596
    %v948 = vmul.f32 %v945, %v947
    %v949 = vadd.f32 %v948, -0.4999988
    %v950 = vmul.f32 %v945, %v949
    %v951 = vadd.f32 1.0, %v950
    %v952 = vmul.f32 %v943, %v943
    %v953 = vmul.f32 %v952, -0.00019511016
    %v954 = vadd.f32 %v953, 0.008332121
    %v955 = vmul.f32 %v952, %v954
    %v956 = vadd.f32 %v955, -0.16666654
    %v957 = vmul.f32 %v952, %v956
    %v958 = vadd.f32 %v957, 1.0
    %v959 = vmul.f32 %v958, %v943
    %vm960 = vweird.f32 %v197
    %v961 = vand.u32 %v944, 3
    %vm962 = vcmp.lt.s32.totalorder %v961, 2
    %vm963 = vcmp.eq.s32.totalorder %v961, 0
    %v964 = vxor.u32 %v959, 2147483648
    %v965 = vsel %vm963, %v951, %v964
    %vm966 = vcmp.eq.s32.totalorder %v961, 2
    %v967 = vxor.u32 %v951, 2147483648
    %v968 = vsel %vm966, %v967, %v959
    %v969 = vsel %vm962, %v965, %v968
    %v970 = vsel %vm960, nan, %v969
    %v971 = vand.u32 2147483647, %v198
    %vm972 = vcmp.le.f32.partialorder %v971, 0.7853982
    %vm973 = vcmp.lt.s32.totalorder %v198, 0
    %v974 = vand.u32 %v198, 2139095040
    %v975 = vshrl.u32 %v974, 23
    %v976 = vsub.s32 %v975, 127
    %v977 = vand.u32 2147483647, %v198
    %v978 = vand.u32 %v977, 8388607
    %v979 = vor.u32 %v978, 8388608
    %v980 = vsub.s32 0, %v979
    %v981 = vadd.s32 %v976, 1
    %vm982 = vcmp.gt.s32.totalorder %v981, 0
    %v983 = vsel %vm982, %v981, 0
    %v984 = vshrl.u32 %v983, 5
    %v985 = vand.u32 %v983, 31
    %v986 = vsub.s32 32, %v985
    %v987 = vshrl.u32 683565275, %v986
    %v988 = vshll.u32 683565275, %v985
    %v989 = vshrl.u32 2475754826, %v986
    %v990 = vor.u32 %v988, %v989
    %v991 = vshll.u32 2475754826, %v985
    %v992 = vshrl.u32 2131351028, %v986
    %v993 = vor.u32 %v991, %v992
    %v994 = vshll.u32 2131351028, %v985
    %v995 = vshrl.u32 2102212464, %v986
    %v996 = vor.u32 %v994, %v995
    %v997 = vshll.u32 2102212464, %v985
    %v998 = vshrl.u32 920167782, %v986
    %v999 = vor.u32 %v997, %v998
    %v1000 = vshll.u32 920167782, %v985
    %v1001 = vshrl.u32 1326507024, %v986
    %v1002 = vor.u32 %v1000, %v1001
    %vm1003 = vcmp.lt.s32.totalorder %v984, 1
    %vm1004 = vcmp.lt.s32.totalorder %v984, 2
    %vm1005 = vcmp.lt.s32.totalorder %v984, 3
    %vm1006 = vcmp.lt.s32.totalorder %v984, 4
    %v1007 = vsel %vm1003, %v987, %v990
    %v1008 = vsel %vm1006, %v996, 2102212464
    %v1009 = vsel %vm1005, %v993, %v1008
    %v1010 = vsel %vm1004, %v1007, %v1009
    %v1011 = vsel %vm1003, %v990, %v993
    %v1012 = vsel %vm1006, %v999, 920167782
    %v1013 = vsel %vm1005, %v996, %v1012
    %v1014 = vsel %vm1004, %v1011, %v1013
    %v1015 = vsel %vm1003, %v993, %v996
    %v1016 = vsel %vm1006, %v1002, 1326507024
    %v1017 = vsel %vm1005, %v999, %v1016
    %v1018 = vsel %vm1004, %v1015, %v1017
    %v1019 = vshll.u32 %v979, 8
    %v1020 = vand.u32 %v1019, 65535
    %v1021 = vshrl.u32 %v1019, 16
    %v1022 = vand.u32 %v1018, 65535
    %v1023 = vshrl.u32 %v1018, 16
    %v1024 = vmul.u32 %v1020, %v1022
    %v1025 = vmul.u32 %v1020, %v1023
    %v1026 = vmul.u32 %v1021, %v1022
    %v1027 = vmul.u32 %v1021, %v1023
    %v1028 = vshll.u32 %v1025, 16
    %v1029 = vshrl.u32 %v1025, 16
    %v1030 = vshll.u32 %v1026, 16
    %v1031 = vshrl.u32 %v1026, 16
    %vm1032 = vc.u32 %v1024, %v1028
    %v1033 = vsel %vm1032, 1, 0
    %v1034 = vadd.s32 %v1024, %v1028
    %v1035 = vadd.s32 %v1027, %v1033
    %vm1036 = vc.u32 %v1034, %v1030
    %v1037 = vsel %vm1036, 1, 0
    %v1038 = vadd.s32 %v1034, %v1030
    %v1039 = vadd.s32 %v1035, %v1037
    %v1040 = vadd.s32 %v1039, %v1029
    %v1041 = vadd.s32 %v1040, %v1031
    %v1042 = vand.u32 %v1019, 65535
    %v1043 = vshrl.u32 %v1019, 16
    %v1044 = vand.u32 %v1014, 65535
    %v1045 = vshrl.u32 %v1014, 16
    %v1046 = vmul.u32 %v1042, %v1044
    %v1047 = vmul.u32 %v1042, %v1045
    %v1048 = vmul.u32 %v1043, %v1044
    %v1049 = vmul.u32 %v1043, %v1045
    %v1050 = vshll.u32 %v1047, 16
    %v1051 = vshrl.u32 %v1047, 16
    %v1052 = vshll.u32 %v1048, 16
    %v1053 = vshrl.u32 %v1048, 16
    %vm1054 = vc.u32 %v1046, %v1050
    %v1055 = vsel %vm1054, 1, 0
    %v1056 = vadd.s32 %v1046, %v1050
    %v1057 = vadd.s32 %v1049, %v1055
    %vm1058 = vc.u32 %v1056, %v1052
    %v1059 = vsel %vm1058, 1, 0
    %v1060 = vadd.s32 %v1056, %v1052
    %v1061 = vadd.s32 %v1057, %v1059
    %v1062 = vadd.s32 %v1061, %v1051
    %v1063 = vadd.s32 %v1062, %v1053
    %v1064 = vmul.u32 %v1019, %v1010
    %v1065 = vadd.s32 %v1041, %v1060
    %vm1066 = vc.u32 %v1041, %v1060
    %v1067 = vadd.s32 %v1063, 1
    %v1068 = vsel %vm1066, %v1067, %v1063
    %v1069 = vadd.s32 %v1064, %v1068
    %v1070 = vadd.s32 %v1069, 536870912
    %v1071 = vshrl.u32 %v1070, 30
    %v1072 = vshll.u32 %v1071, 30
    %v1073 = vsub.s32 %v1069, %v1072
    %vm1074 = vcmp.lt.s32.totalorder %v1073, 0
    %v1075 = vsub.s32 0, %v1073
    %v1076 = vsel %vm1074, %v1075, %v1073
    %v1077 = vclz %v1076
    %v1078 = vsub.s32 %v1077, 2
    %vm1079 = vcmp.gt.s32.totalorder 0, %v1078
    %v1080 = vsel %vm1079, 0, %v1078
    %v1081 = vsub.s32 32, %v1080
    %v1082 = vshll.u32 %v1073, %v1080
    %v1083 = vshrl.u32 %v1065, %v1081
    %v1084 = vor.u32 %v1082, %v1083
    %v1085 = vsub.s32 4294967266, %v1080
    %v1086 = vadd.s32 %v1085, 127
    %v1087 = vshll.u32 %v1086, 23
    %v1088 = vor.u32 4788187, %v1087
    %v1089 = vand.u32 2147483647, %v1088
    %v1091 = vcvt.s32.f32 %v1084
    %v1092 = vmul.f32 %v1091, %v1089
    %v1093 = vxor.u32 %v1092, 2147483648
    %v1094 = vsel %vm973, %v1093, %v1092
    %v1095 = vsub.s32 4, %v1071
    %v1096 = vsel %vm973, %v1095, %v1071
    %v1097 = vsel %vm972, %v198, %v1094
    %v1098 = vsel %vm972, 0, %v1096
    %v1099 = vmul.f32 %v1097, %v1097
    %v1100 = vmul.f32 %v1099, -0.001358992
    %v1101 = vadd.f32 %v1100, 0.041655596
    %v1102 = vmul.f32 %v1099, %v1101
    %v1103 = vadd.f32 %v1102, -0.4999988
    %v1104 = vmul.f32 %v1099, %v1103
    %v1105 = vadd.f32 1.0, %v1104
    %v1106 = vmul.f32 %v1097, %v1097
    %v1107 = vmul.f32 %v1106, -0.00019511016
    %v1108 = vadd.f32 %v1107, 0.008332121
    %v1109 = vmul.f32 %v1106, %v1108
    %v1110 = vadd.f32 %v1109, -0.16666654
    %v1111 = vmul.f32 %v1106, %v1110
    %v1112 = vadd.f32 %v1111, 1.0
    %v1113 = vmul.f32 %v1112, %v1097
    %vm1114 = vweird.f32 %v198
    %v1115 = vand.u32 %v1098, 3
    %vm1116 = vcmp.lt.s32.totalorder %v1115, 2
    %vm1117 = vcmp.eq.s32.totalorder %v1115, 0
    %v1118 = vxor.u32 %v1113, 2147483648
    %v1119 = vsel %vm1117, %v1105, %v1118
    %vm1120 = vcmp.eq.s32.totalorder %v1115, 2
    %v1121 = vxor.u32 %v1105, 2147483648
    %v1122 = vsel %vm1120, %v1121, %v1113
    %v1123 = vsel %vm1116, %v1119, %v1122
    %v1124 = vsel %vm1114, nan, %v1123
    %v1125 = vand.u32 2147483647, %v199
    %vm1126 = vcmp.le.f32.partialorder %v1125, 0.7853982
    %vm1127 = vcmp.lt.s32.totalorder %v199, 0
    %v1128 = vand.u32 %v199, 2139095040
    %v1129 = vshrl.u32 %v1128, 23
    %v1130 = vsub.s32 %v1129, 127
    %v1131 = vand.u32 2147483647, %v199
    %v1132 = vand.u32 %v1131, 8388607
    %v1133 = vor.u32 %v1132, 8388608
    %v1134 = vsub.s32 0, %v1133
    %v1135 = vadd.s32 %v1130, 1
    %vm1136 = vcmp.gt.s32.totalorder %v1135, 0
    %v1137 = vsel %vm1136, %v1135, 0
    %v1138 = vshrl.u32 %v1137, 5
    %v1139 = vand.u32 %v1137, 31
    %v1140 = vsub.s32 32, %v1139
    %v1141 = vshrl.u32 683565275, %v1140
    %v1142 = vshll.u32 683565275, %v1139
    %v1143 = vshrl.u32 2475754826, %v1140
    %v1144 = vor.u32 %v1142, %v1143
    %v1145 = vshll.u32 2475754826, %v1139
    %v1146 = vshrl.u32 2131351028, %v1140
    %v1147 = vor.u32 %v1145, %v1146
    %v1148 = vshll.u32 2131351028, %v1139
    %v1149 = vshrl.u32 2102212464, %v1140
    %v1150 = vor.u32 %v1148, %v1149
    %v1151 = vshll.u32 2102212464, %v1139
    %v1152 = vshrl.u32 920167782, %v1140
    %v1153 = vor.u32 %v1151, %v1152
    %v1154 = vshll.u32 920167782, %v1139
    %v1155 = vshrl.u32 1326507024, %v1140
    %v1156 = vor.u32 %v1154, %v1155
    %vm1157 = vcmp.lt.s32.totalorder %v1138, 1
    %vm1158 = vcmp.lt.s32.totalorder %v1138, 2
    %vm1159 = vcmp.lt.s32.totalorder %v1138, 3
    %vm1160 = vcmp.lt.s32.totalorder %v1138, 4
    %v1161 = vsel %vm1157, %v1141, %v1144
    %v1162 = vsel %vm1160, %v1150, 2102212464
    %v1163 = vsel %vm1159, %v1147, %v1162
    %v1164 = vsel %vm1158, %v1161, %v1163
    %v1165 = vsel %vm1157, %v1144, %v1147
    %v1166 = vsel %vm1160, %v1153, 920167782
    %v1167 = vsel %vm1159, %v1150, %v1166
    %v1168 = vsel %vm1158, %v1165, %v1167
    %v1169 = vsel %vm1157, %v1147, %v1150
    %v1170 = vsel %vm1160, %v1156, 1326507024
    %v1171 = vsel %vm1159, %v1153, %v1170
    %v1172 = vsel %vm1158, %v1169, %v1171
    %v1173 = vshll.u32 %v1133, 8
    %v1174 = vand.u32 %v1173, 65535
    %v1175 = vshrl.u32 %v1173, 16
    %v1176 = vand.u32 %v1172, 65535
    %v1177 = vshrl.u32 %v1172, 16
    %v1178 = vmul.u32 %v1174, %v1176
    %v1179 = vmul.u32 %v1174, %v1177
    %v1180 = vmul.u32 %v1175, %v1176
    %v1181 = vmul.u32 %v1175, %v1177
    %v1182 = vshll.u32 %v1179, 16
    %v1183 = vshrl.u32 %v1179, 16
    %v1184 = vshll.u32 %v1180, 16
    %v1185 = vshrl.u32 %v1180, 16
    %vm1186 = vc.u32 %v1178, %v1182
    %v1187 = vsel %vm1186, 1, 0
    %v1188 = vadd.s32 %v1178, %v1182
    %v1189 = vadd.s32 %v1181, %v1187
    %vm1190 = vc.u32 %v1188, %v1184
    %v1191 = vsel %vm1190, 1, 0
    %v1192 = vadd.s32 %v1188, %v1184
    %v1193 = vadd.s32 %v1189, %v1191
    %v1194 = vadd.s32 %v1193, %v1183
    %v1195 = vadd.s32 %v1194, %v1185
    %v1196 = vand.u32 %v1173, 65535
    %v1197 = vshrl.u32 %v1173, 16
    %v1198 = vand.u32 %v1168, 65535
    %v1199 = vshrl.u32 %v1168, 16
    %v1200 = vmul.u32 %v1196, %v1198
    %v1201 = vmul.u32 %v1196, %v1199
    %v1202 = vmul.u32 %v1197, %v1198
    %v1203 = vmul.u32 %v1197, %v1199
    %v1204 = vshll.u32 %v1201, 16
    %v1205 = vshrl.u32 %v1201, 16
    %v1206 = vshll.u32 %v1202, 16
    %v1207 = vshrl.u32 %v1202, 16
    %vm1208 = vc.u32 %v1200, %v1204
    %v1209 = vsel %vm1208, 1, 0
    %v1210 = vadd.s32 %v1200, %v1204
    %v1211 = vadd.s32 %v1203, %v1209
    %vm1212 = vc.u32 %v1210, %v1206
    %v1213 = vsel %vm1212, 1, 0
    %v1214 = vadd.s32 %v1210, %v1206
    %v1215 = vadd.s32 %v1211, %v1213
    %v1216 = vadd.s32 %v1215, %v1205
    %v1217 = vadd.s32 %v1216, %v1207
    %v1218 = vmul.u32 %v1173, %v1164
    %v1219 = vadd.s32 %v1195, %v1214
    %vm1220 = vc.u32 %v1195, %v1214
    %v1221 = vadd.s32 %v1217, 1
    %v1222 = vsel %vm1220, %v1221, %v1217
    %v1223 = vadd.s32 %v1218, %v1222
    %v1224 = vadd.s32 %v1223, 536870912
    %v1225 = vshrl.u32 %v1224, 30
    %v1226 = vshll.u32 %v1225, 30
    %v1227 = vsub.s32 %v1223, %v1226
    %vm1228 = vcmp.lt.s32.totalorder %v1227, 0
    %v1229 = vsub.s32 0, %v1227
    %v1230 = vsel %vm1228, %v1229, %v1227
    %v1231 = vclz %v1230
    %v1232 = vsub.s32 %v1231, 2
    %vm1233 = vcmp.gt.s32.totalorder 0, %v1232
    %v1234 = vsel %vm1233, 0, %v1232
    %v1235 = vsub.s32 32, %v1234
    %v1236 = vshll.u32 %v1227, %v1234
    %v1237 = vshrl.u32 %v1219, %v1235
    %v1238 = vor.u32 %v1236, %v1237
    %v1239 = vsub.s32 4294967266, %v1234
    %v1240 = vadd.s32 %v1239, 127
    %v1241 = vshll.u32 %v1240, 23
    %v1242 = vor.u32 4788187, %v1241
    %v1243 = vand.u32 2147483647, %v1242
    %v1245 = vcvt.s32.f32 %v1238
    %v1246 = vmul.f32 %v1245, %v1243
    %v1247 = vxor.u32 %v1246, 2147483648
    %v1248 = vsel %vm1127, %v1247, %v1246
    %v1249 = vsub.s32 4, %v1225
    %v1250 = vsel %vm1127, %v1249, %v1225
    %v1251 = vsel %vm1126, %v199, %v1248
    %v1252 = vsel %vm1126, 0, %v1250
    %v1253 = vmul.f32 %v1251, %v1251
    %v1254 = vmul.f32 %v1253, -0.001358992
    %v1255 = vadd.f32 %v1254, 0.041655596
    %v1256 = vmul.f32 %v1253, %v1255
    %v1257 = vadd.f32 %v1256, -0.4999988
    %v1258 = vmul.f32 %v1253, %v1257
    %v1259 = vadd.f32 1.0, %v1258
    %v1260 = vmul.f32 %v1251, %v1251
    %v1261 = vmul.f32 %v1260, -0.00019511016
    %v1262 = vadd.f32 %v1261, 0.008332121
    %v1263 = vmul.f32 %v1260, %v1262
    %v1264 = vadd.f32 %v1263, -0.16666654
    %v1265 = vmul.f32 %v1260, %v1264
    %v1266 = vadd.f32 %v1265, 1.0
    %v1267 = vmul.f32 %v1266, %v1251
    %vm1268 = vweird.f32 %v199
    %v1269 = vand.u32 %v1252, 3
    %vm1270 = vcmp.lt.s32.totalorder %v1269, 2
    %vm1271 = vcmp.eq.s32.totalorder %v1269, 0
    %v1272 = vxor.u32 %v1267, 2147483648
    %v1273 = vsel %vm1271, %v1259, %v1272
    %vm1274 = vcmp.eq.s32.totalorder %v1269, 2
    %v1275 = vxor.u32 %v1259, 2147483648
    %v1276 = vsel %vm1274, %v1275, %v1267
    %v1277 = vsel %vm1270, %v1273, %v1276
    %v1278 = vsel %vm1268, nan, %v1277
    %v1279 = vand.u32 2147483647, %v200
    %vm1280 = vcmp.le.f32.partialorder %v1279, 0.7853982
    %vm1281 = vcmp.lt.s32.totalorder %v200, 0
    %v1282 = vand.u32 %v200, 2139095040
    %v1283 = vshrl.u32 %v1282, 23
    %v1284 = vsub.s32 %v1283, 127
    %v1285 = vand.u32 2147483647, %v200
    %v1286 = vand.u32 %v1285, 8388607
    %v1287 = vor.u32 %v1286, 8388608
    %v1288 = vsub.s32 0, %v1287
    %v1289 = vadd.s32 %v1284, 1
    %vm1290 = vcmp.gt.s32.totalorder %v1289, 0
    %v1291 = vsel %vm1290, %v1289, 0
    %v1292 = vshrl.u32 %v1291, 5
    %v1293 = vand.u32 %v1291, 31
    %v1294 = vsub.s32 32, %v1293
    %v1295 = vshrl.u32 683565275, %v1294
    %v1296 = vshll.u32 683565275, %v1293
    %v1297 = vshrl.u32 2475754826, %v1294
    %v1298 = vor.u32 %v1296, %v1297
    %v1299 = vshll.u32 2475754826, %v1293
    %v1300 = vshrl.u32 2131351028, %v1294
    %v1301 = vor.u32 %v1299, %v1300
    %v1302 = vshll.u32 2131351028, %v1293
    %v1303 = vshrl.u32 2102212464, %v1294
    %v1304 = vor.u32 %v1302, %v1303
    %v1305 = vshll.u32 2102212464, %v1293
    %v1306 = vshrl.u32 920167782, %v1294
    %v1307 = vor.u32 %v1305, %v1306
    %v1308 = vshll.u32 920167782, %v1293
    %v1309 = vshrl.u32 1326507024, %v1294
    %v1310 = vor.u32 %v1308, %v1309
    %vm1311 = vcmp.lt.s32.totalorder %v1292, 1
    %vm1312 = vcmp.lt.s32.totalorder %v1292, 2
    %vm1313 = vcmp.lt.s32.totalorder %v1292, 3
    %vm1314 = vcmp.lt.s32.totalorder %v1292, 4
    %v1315 = vsel %vm1311, %v1295, %v1298
    %v1316 = vsel %vm1314, %v1304, 2102212464
    %v1317 = vsel %vm1313, %v1301, %v1316
    %v1318 = vsel %vm1312, %v1315, %v1317
    %v1319 = vsel %vm1311, %v1298, %v1301
    %v1320 = vsel %vm1314, %v1307, 920167782
    %v1321 = vsel %vm1313, %v1304, %v1320
    %v1322 = vsel %vm1312, %v1319, %v1321
    %v1323 = vsel %vm1311, %v1301, %v1304
    %v1324 = vsel %vm1314, %v1310, 1326507024
    %v1325 = vsel %vm1313, %v1307, %v1324
    %v1326 = vsel %vm1312, %v1323, %v1325
    %v1327 = vshll.u32 %v1287, 8
    %v1328 = vand.u32 %v1327, 65535
    %v1329 = vshrl.u32 %v1327, 16
    %v1330 = vand.u32 %v1326, 65535
    %v1331 = vshrl.u32 %v1326, 16
    %v1332 = vmul.u32 %v1328, %v1330
    %v1333 = vmul.u32 %v1328, %v1331
    %v1334 = vmul.u32 %v1329, %v1330
    %v1335 = vmul.u32 %v1329, %v1331
    %v1336 = vshll.u32 %v1333, 16
    %v1337 = vshrl.u32 %v1333, 16
    %v1338 = vshll.u32 %v1334, 16
    %v1339 = vshrl.u32 %v1334, 16
    %vm1340 = vc.u32 %v1332, %v1336
    %v1341 = vsel %vm1340, 1, 0
    %v1342 = vadd.s32 %v1332, %v1336
    %v1343 = vadd.s32 %v1335, %v1341
    %vm1344 = vc.u32 %v1342, %v1338
    %v1345 = vsel %vm1344, 1, 0
    %v1346 = vadd.s32 %v1342, %v1338
    %v1347 = vadd.s32 %v1343, %v1345
    %v1348 = vadd.s32 %v1347, %v1337
    %v1349 = vadd.s32 %v1348, %v1339
    %v1350 = vand.u32 %v1327, 65535
    %v1351 = vshrl.u32 %v1327, 16
    %v1352 = vand.u32 %v1322, 65535
    %v1353 = vshrl.u32 %v1322, 16
    %v1354 = vmul.u32 %v1350, %v1352
    %v1355 = vmul.u32 %v1350, %v1353
    %v1356 = vmul.u32 %v1351, %v1352
    %v1357 = vmul.u32 %v1351, %v1353
    %v1358 = vshll.u32 %v1355, 16
    %v1359 = vshrl.u32 %v1355, 16
    %v1360 = vshll.u32 %v1356, 16
    %v1361 = vshrl.u32 %v1356, 16
    %vm1362 = vc.u32 %v1354, %v1358
    %v1363 = vsel %vm1362, 1, 0
    %v1364 = vadd.s32 %v1354, %v1358
    %v1365 = vadd.s32 %v1357, %v1363
    %vm1366 = vc.u32 %v1364, %v1360
    %v1367 = vsel %vm1366, 1, 0
    %v1368 = vadd.s32 %v1364, %v1360
    %v1369 = vadd.s32 %v1365, %v1367
    %v1370 = vadd.s32 %v1369, %v1359
    %v1371 = vadd.s32 %v1370, %v1361
    %v1372 = vmul.u32 %v1327, %v1318
    %v1373 = vadd.s32 %v1349, %v1368
    %vm1374 = vc.u32 %v1349, %v1368
    %v1375 = vadd.s32 %v1371, 1
    %v1376 = vsel %vm1374, %v1375, %v1371
    %v1377 = vadd.s32 %v1372, %v1376
    %v1378 = vadd.s32 %v1377, 536870912
    %v1379 = vshrl.u32 %v1378, 30
    %v1380 = vshll.u32 %v1379, 30
    %v1381 = vsub.s32 %v1377, %v1380
    %vm1382 = vcmp.lt.s32.totalorder %v1381, 0
    %v1383 = vsub.s32 0, %v1381
    %v1384 = vsel %vm1382, %v1383, %v1381
    %v1385 = vclz %v1384
    %v1386 = vsub.s32 %v1385, 2
    %vm1387 = vcmp.gt.s32.totalorder 0, %v1386
    %v1388 = vsel %vm1387, 0, %v1386
    %v1389 = vsub.s32 32, %v1388
    %v1390 = vshll.u32 %v1381, %v1388
    %v1391 = vshrl.u32 %v1373, %v1389
    %v1392 = vor.u32 %v1390, %v1391
    %v1393 = vsub.s32 4294967266, %v1388
    %v1394 = vadd.s32 %v1393, 127
    %v1395 = vshll.u32 %v1394, 23
    %v1396 = vor.u32 4788187, %v1395
    %v1397 = vand.u32 2147483647, %v1396
    %v1399 = vcvt.s32.f32 %v1392
    %v1400 = vmul.f32 %v1399, %v1397
    %v1401 = vxor.u32 %v1400, 2147483648
    %v1402 = vsel %vm1281, %v1401, %v1400
    %v1403 = vsub.s32 4, %v1379
    %v1404 = vsel %vm1281, %v1403, %v1379
    %v1405 = vsel %vm1280, %v200, %v1402
    %v1406 = vsel %vm1280, 0, %v1404
    %v1407 = vmul.f32 %v1405, %v1405
    %v1408 = vmul.f32 %v1407, -0.001358992
    %v1409 = vadd.f32 %v1408, 0.041655596
    %v1410 = vmul.f32 %v1407, %v1409
    %v1411 = vadd.f32 %v1410, -0.4999988
    %v1412 = vmul.f32 %v1407, %v1411
    %v1413 = vadd.f32 1.0, %v1412
    %v1414 = vmul.f32 %v1405, %v1405
    %v1415 = vmul.f32 %v1414, -0.00019511016
    %v1416 = vadd.f32 %v1415, 0.008332121
    %v1417 = vmul.f32 %v1414, %v1416
    %v1418 = vadd.f32 %v1417, -0.16666654
    %v1419 = vmul.f32 %v1414, %v1418
    %v1420 = vadd.f32 %v1419, 1.0
    %v1421 = vmul.f32 %v1420, %v1405
    %vm1422 = vweird.f32 %v200
    %v1423 = vand.u32 %v1406, 3
    %vm1424 = vcmp.lt.s32.totalorder %v1423, 2
    %vm1425 = vcmp.eq.s32.totalorder %v1423, 0
    %v1426 = vxor.u32 %v1421, 2147483648
    %v1427 = vsel %vm1425, %v1413, %v1426
    %vm1428 = vcmp.eq.s32.totalorder %v1423, 2
    %v1429 = vxor.u32 %v1413, 2147483648
    %v1430 = vsel %vm1428, %v1429, %v1421
    %v1431 = vsel %vm1424, %v1427, %v1430
    %v1432 = vsel %vm1422, nan, %v1431
    %v1433 = vadd.f32 %v354, 1.0
    %v1434 = vadd.f32 %v508, 1.0
    %v1435 = vadd.f32 %v662, 1.0
    %v1436 = vadd.f32 %v816, 1.0
    %v1437 = vadd.f32 %v970, 1.0
    %v1438 = vadd.f32 %v1124, 1.0
    %v1439 = vadd.f32 %v1278, 1.0
    %v1440 = vadd.f32 %v1432, 1.0
    %v1441 = vmul.f32 %v1433, 0.5
    %v1442 = vmul.f32 %v1434, 0.5
    %v1443 = vmul.f32 %v1435, 0.5
    %v1444 = vmul.f32 %v1436, 0.5
    %v1445 = vmul.f32 %v1437, 0.5
    %v1446 = vmul.f32 %v1438, 0.5
    %v1447 = vmul.f32 %v1439, 0.5
    %v1448 = vmul.f32 %v1440, 0.5
    %vm1449 = vcmp.lt.f32.partialorder %v185, 5.0
    %vm1450 = vcmp.lt.f32.partialorder %v186, 5.0
    %vm1451 = vcmp.lt.f32.partialorder %v187, 5.0
    %vm1452 = vcmp.lt.f32.partialorder %v188, 5.0
    %vm1453 = vcmp.lt.f32.partialorder %v189, 5.0
    %vm1454 = vcmp.lt.f32.partialorder %v190, 5.0
    %vm1455 = vcmp.lt.f32.partialorder %v191, 5.0
    %vm1456 = vcmp.lt.f32.partialorder %v192, 5.0
    %v1457 = vsel %vm1449, %v1441, 0.0
    %v1458 = vsel %vm1450, %v1442, 0.0
    %v1459 = vsel %vm1451, %v1443, 0.0
    %v1460 = vsel %vm1452, %v1444, 0.0
    %v1461 = vsel %vm1453, %v1445, 0.0
    %v1462 = vsel %vm1454, %v1446, 0.0
    %v1463 = vsel %vm1455, %v1447, 0.0
    %v1464 = vsel %vm1456, %v1448, 0.0
    %v1465 = vsub.f32 0.0, %v185
    %v1466 = vsub.f32 0.0, %v186
    %v1467 = vsub.f32 0.0, %v187
    %v1468 = vsub.f32 0.0, %v188
    %v1469 = vsub.f32 0.0, %v189
    %v1470 = vsub.f32 0.0, %v190
    %v1471 = vsub.f32 0.0, %v191
    %v1472 = vsub.f32 0.0, %v192
    %v1473 = vmul.f32 %v1465, 1.442695
    %v1474 = vpow.pop %v1473
    %v1475 = vmul.f32 %v1466, 1.442695
    %v1476 = vpow.pop %v1475
    %v1477 = vmul.f32 %v1467, 1.442695
    %v1478 = vpow.pop %v1477
    %v1479 = vmul.f32 %v1468, 1.442695
    %v1480 = vpow.pop %v1479
    %v1481 = vmul.f32 %v1469, 1.442695
    %v1482 = vpow.pop %v1481
    %v1483 = vmul.f32 %v1470, 1.442695
    %v1484 = vpow.pop %v1483
    %v1485 = vmul.f32 %v1471, 1.442695
    %v1486 = vpow.pop %v1485
    %v1487 = vmul.f32 %v1472, 1.442695
    %v1488 = vpow.pop %v1487
    %v1489 = vperm.slane %v20, 0
    %v1490 = vsub.f32 %v1474, %v1489
    %v1491 = vsub.f32 %v1476, %v1489
    %v1492 = vsub.f32 %v1478, %v1489
    %v1493 = vsub.f32 %v1480, %v1489
    %v1494 = vsub.f32 %v1482, %v1489
    %v1495 = vsub.f32 %v1484, %v1489
    %v1496 = vsub.f32 %v1486, %v1489
    %v1497 = vsub.f32 %v1488, %v1489
    %v1498 = vmul.f32 %v1490, %v1490
    %v1499 = vmul.f32 %v1491, %v1491
    %v1500 = vmul.f32 %v1492, %v1492
    %v1501 = vmul.f32 %v1493, %v1493
    %v1502 = vmul.f32 %v1494, %v1494
    %v1503 = vmul.f32 %v1495, %v1495
    %v1504 = vmul.f32 %v1496, %v1496
    %v1505 = vmul.f32 %v1497, %v1497
    %v1506 = vperm.slane %v20, 1
    %v1507 = vmul.f32 %v1506, %v1498
    %v1508 = vmul.f32 %v1506, %v1499
    %v1509 = vmul.f32 %v1506, %v1500
    %v1510 = vmul.f32 %v1506, %v1501
    %v1511 = vmul.f32 %v1506, %v1502
    %v1512 = vmul.f32 %v1506, %v1503
    %v1513 = vmul.f32 %v1506, %v1504
    %v1514 = vmul.f32 %v1506, %v1505
    %v1515 = vmul.f32 %v1507, 1.442695
    %v1516 = vpow.pop %v1515
    %v1517 = vmul.f32 %v1508, 1.442695
    %v1518 = vpow.pop %v1517
    %v1519 = vmul.f32 %v1509, 1.442695
    %v1520 = vpow.pop %v1519
    %v1521 = vmul.f32 %v1510, 1.442695
    %v1522 = vpow.pop %v1521
    %v1523 = vmul.f32 %v1511, 1.442695
    %v1524 = vpow.pop %v1523
    %v1525 = vmul.f32 %v1512, 1.442695
    %v1526 = vpow.pop %v1525
    %v1527 = vmul.f32 %v1513, 1.442695
    %v1528 = vpow.pop %v1527
    %v1529 = vmul.f32 %v1514, 1.442695
    %v1530 = vpow.pop %v1529
    %v1531 = vmul.f32 %v1457, %v1516
    %v1532 = vmul.f32 %v1458, %v1518
    %v1533 = vmul.f32 %v1459, %v1520
    %v1534 = vmul.f32 %v1460, %v1522
    %v1535 = vmul.f32 %v1461, %v1524
    %v1536 = vmul.f32 %v1462, %v1526
    %v1537 = vmul.f32 %v1463, %v1528
    %v1538 = vmul.f32 %v1464, %v1530
    %1539 = vst [vmem:[#allocation2] sm:$0xff] %v1531
    %1540 = vst [vmem:[#allocation2 + $0x8] sm:$0xff] %v1532
    %1541 = vst [vmem:[#allocation2 + $0x10] sm:$0xff] %v1533
    %1542 = vst [vmem:[#allocation2 + $0x18] sm:$0xff] %v1534
    %1543 = vst [vmem:[#allocation2 + $0x20] sm:$0xff] %v1535
    %1544 = vst [vmem:[#allocation2 + $0x28] sm:$0xff] %v1536
    %1545 = vst [vmem:[#allocation2 + $0x30] sm:$0xff] %v1537
    %1546 = vst [vmem:[#allocation2 + $0x38] sm:$0xff] %v1538
    // Predicated region
    $region10: #{tpu_custom_call.1} parent=1 // pred_check
      _
    $region11: #{tpu_custom_call.1} parent=1 // pred_check_branch
      %1548 = sbr.rel (0) target = $region13
    $region12: #{tpu_custom_call.1} parent=1 // pred_region
      %1550 = vsyncadd [#allocation3], 0
      %s1551 = sshll.u32 [#allocation2], 4
      %s1552 = int_to_ptr.vmem [resolvable:$true] %s1551
      %s1553 = sshll.u32 %s2, 4
      %s1554 = int_to_ptr.hbm [resolvable:$true] %s1553
      %1559 = dma.vmem_to_hbm [thread:$0]  %s1552, 1024, %s1554, [#allocation3], 128, 128, 8
    $region13: #{tpu_custom_call.1} parent=1 // pred_fallthru
      _
    // Predicated region
    $region14: #{tpu_custom_call.1} parent=1 // pred_check
      _
    $region15: #{tpu_custom_call.1} parent=1 // pred_check_branch
      %1561 = sbr.rel (0) target = $region17
    $region16: #{tpu_custom_call.1} parent=1 // pred_region
      %1563 = dma.done [#allocation3], 1024
    $region17: #{tpu_custom_call.1} parent=1 // pred_fallthru
      _
    %1564 = vsyncpa [#allocation3], 1

</llo_original>
